<compile_context>
chip_gen: v7x
topology: tpu7x:2x2x1
jax: 0.10.0
libtpu: 0.0.40
codegen_flags: <defaults>
</compile_context>

<pallas_src>
import math

import jax
import jax.numpy as jnp
from jax.experimental import pallas as pl
from jax.experimental.pallas import tpu as pltpu


# ---------------------------------------------------------------------------
# Alignment-aware tile picking
# ---------------------------------------------------------------------------

def _tile(dim, target, align):
    """Largest multiple of `align` that divides `dim` and is <= target; otherwise the
    full dim (always legal: block == full array dim satisfies the (8,128) rule)."""
    if dim <= target:
        return dim
    if dim % align == 0:
        t = (target // align) * align
        while dim % t:
            t -= align
        if t >= align:
            return t
    # TODO(synk): pad + in-kernel masking for large dims not divisible by `align`.
    return dim


# ---------------------------------------------------------------------------
# Tiled linear kernel:  y = x @ W_t + b   (W_t stored pre-transposed as (K, N))
# ---------------------------------------------------------------------------

def _linear_kernel(x_ref, w_ref, b_ref, o_ref, acc_ref):
    k = pl.program_id(2)

    @pl.when(k == 0)
    def _():
        acc_ref[...] = jnp.zeros_like(acc_ref)

    # Weight already (K, N): no in-kernel transpose; f32 accumulation on the MXU.
    acc_ref[...] += jnp.dot(x_ref[...], w_ref[...],
                            preferred_element_type=jnp.float32)

    @pl.when(k == pl.num_programs(2) - 1)
    def _():
        o_ref[...] = (acc_ref[...] + b_ref[...]).astype(o_ref.dtype)


def _linear(x2d, w_t, b):
    """x2d: (M, K); w_t: (K, N) pre-transposed weight; b: (N,) -> (M, N)."""
    M, K = x2d.shape
    Kw, N = w_t.shape
    assert K == Kw
    tm = _tile(M, 512, 8)
    tn = _tile(N, 512, 128)
    tk = _tile(K, 512, 128)
    b2d = b.reshape(1, N).astype(jnp.float32)     # tiny O(N) cast, not a weight pass
    return pl.pallas_call(
        _linear_kernel,
        out_shape=jax.ShapeDtypeStruct((M, N), x2d.dtype),
        grid=(M // tm, N // tn, K // tk),
        in_specs=[
            pl.BlockSpec((tm, tk), lambda i, j, k: (i, k)),
            pl.BlockSpec((tk, tn), lambda i, j, k: (k, j)),
            pl.BlockSpec((1, tn), lambda i, j, k: (0, j)),
        ],
        out_specs=pl.BlockSpec((tm, tn), lambda i, j, k: (i, j)),
        scratch_shapes=[pltpu.VMEM((tm, tn), jnp.float32)],
        compiler_params=pltpu.CompilerParams(
            dimension_semantics=("parallel", "parallel", "arbitrary")),
    )(x2d, w_t, b2d)


# ---------------------------------------------------------------------------
# Flash (online-softmax) causal attention, reading straight from the QKV buffer
# ---------------------------------------------------------------------------

def _heads_per_group(H, D):
    """(heads per kernel invocation, lane-aligned?).  D % 128 == 0 -> 1 head; D == 64
    -> 2 heads (128 lanes); tiny models -> all heads via full-width (3E) slabs."""
    if D % 128 == 0:
        return 1, True
    for g in range(2, H + 1):
        if H % g == 0 and (g * D) % 128 == 0:
            return g, True
    return H, False


def _make_attn_kernel(*, D, G, scale, q_off, k_off, v_off, tq, tk, approx_recip):
    """Online-softmax causal attention over G heads per invocation.  q/k/v arrive as
    column slices of the fused (B*S, 3E) QKV buffer; per-head running stats live in
    f32 VMEM scratch; the 1/sqrt(D) scale is folded into the f32 score tile."""

    def kernel(kpm_ref, q_ref, k_ref, v_ref, o_ref, m_ref, l_ref, acc_ref):
        qi = pl.program_id(2)
        ki = pl.program_id(3)
        # Last kv tile that intersects the causal mask for this q tile.
        ki_last = (qi * tq + tq - 1) // tk

        @pl.when(ki == 0)
        def _():
            m_ref[...] = jnp.full_like(m_ref, -jnp.inf)
            l_ref[...] = jnp.zeros_like(l_ref)
            acc_ref[...] = jnp.zeros_like(acc_ref)

        @pl.when(ki <= ki_last)          # skip kv tiles fully above the diagonal
        def _():
            # Per-tile causal + key-padding mask (tiny iotas, shared by all G heads).
            row = qi * tq + jax.lax.broadcasted_iota(jnp.int32, (tq, tk), 0)
            col = ki * tk + jax.lax.broadcasted_iota(jnp.int32, (tq, tk), 1)
            valid = (col <= row) & (kpm_ref[0] > 0.5)          # (tq,tk) & (1,tk)

            qblk = q_ref[...]
            kblk = k_ref[...]
            vblk = v_ref[...]
            for g in range(G):
                qh = qblk[:, q_off + g * D:q_off + (g + 1) * D]     # (tq, D)
                kh = kblk[:, k_off + g * D:k_off + (g + 1) * D]     # (tk, D)
                vh = vblk[:, v_off + g * D:v_off + (g + 1) * D]     # (tk, D)

                # Scores on the MXU, contracting on D (no in-kernel transpose);
                # 1/sqrt(D) applied to the f32 score tile (VPU, hidden under MXU).
                s = jax.lax.dot_general(qh, kh, (((1,), (1,)), ((), ())),
                                        preferred_element_type=jnp.float32) * scale
                s = jnp.where(valid, s, -1e30)

                m_prev = m_ref[g]
                m_new = jnp.maximum(m_prev, jnp.max(s, axis=-1, keepdims=True))
                alpha = jnp.exp(m_prev - m_new)
                p = jnp.exp(s - m_new)
                l_ref[g] = alpha * l_ref[g] + jnp.sum(p, axis=-1, keepdims=True)
                acc_ref[g] = alpha * acc_ref[g] + jnp.dot(
                    p.astype(vh.dtype), vh, preferred_element_type=jnp.float32)
                m_ref[g] = m_new

        @pl.when(ki == pl.num_programs(3) - 1)
        def _():
            # Finalize once per q tile; reciprocal runs on the (otherwise idle) EUP.
            for g in range(G):
                o_ref[:, g * D:(g + 1) * D] = (
                    acc_ref[g] * pl.reciprocal(l_ref[g], approx=approx_recip)
                ).astype(o_ref.dtype)

    return kernel


def _flash_attention(qkv, kpm3, *, B, S, E, H, D):
    """qkv: (B*S, 3E) fused projection output (columns ordered (three, head, d));
    kpm3: (B, 1, S) float32 key-padding mask (1.0 = keep).  Returns (B*S, E)."""
    M = B * S
    assert qkv.shape == (M, 3 * E)

    tq = _tile(S, 256, 8)      # q-tile rows (sublane dim); 256 amortizes rescales
    tk = _tile(S, 512, 128)    # kv-tile rows; 512 feeds the 256-wide MXU on v6e/v7x
    nq, nk = S // tq, S // tk

    G, aligned = _heads_per_group(H, D)
    HG = H // G

    def kv_row(qi, ki):
        # Clamp kv blocks fully above the diagonal to the last useful block so no
        # extra K/V DMA is issued while those grid steps are skipped.
        ki_last = (qi * tq + tq - 1) // tk
        return jnp.minimum(ki, ki_last)

    if aligned:
        # Lane-dense per-head-group column blocks straight out of the QKV buffer.
        wg = G * D                      # multiple of 128
        ncq = E // wg                   # column blocks per q/k/v section
        q_spec = pl.BlockSpec((tq, wg), lambda b, hg, qi, ki: (b * nq + qi, hg))
        k_spec = pl.BlockSpec(
            (tk, wg), lambda b, hg, qi, ki: (b * nk + kv_row(qi, ki), ncq + hg))
        v_spec = pl.BlockSpec(
            (tk, wg), lambda b, hg, qi, ki: (b * nk + kv_row(qi, ki), 2 * ncq + hg))
        o_spec = pl.BlockSpec((tq, wg), lambda b, hg, qi, ki: (b * nq + qi, hg))
        q_off = k_off = v_off = 0
    else:
        # Small-model fallback (E < 128): full-width (3E) row slabs (block == full
        # lane dim, always legal); heads are sliced inside the kernel.
        q_spec = pl.BlockSpec((tq, 3 * E), lambda b, hg, qi, ki: (b * nq + qi, 0))
        kv_map = lambda b, hg, qi, ki: (b * nk + kv_row(qi, ki), 0)
        k_spec = pl.BlockSpec((tk, 3 * E), kv_map)
        v_spec = pl.BlockSpec((tk, 3 * E), kv_map)
        o_spec = pl.BlockSpec((tq, E), lambda b, hg, qi, ki: (b * nq + qi, 0))
        q_off, k_off, v_off = 0, E, 2 * E

    kpm_spec = pl.BlockSpec((1, 1, tk),
                            lambda b, hg, qi, ki: (b, 0, kv_row(qi, ki)))

    kernel = _make_attn_kernel(
        D=D, G=G, scale=1.0 / math.sqrt(D),
        q_off=q_off, k_off=k_off, v_off=v_off, tq=tq, tk=tk,
        approx_recip=(qkv.dtype != jnp.float32))

    return pl.pallas_call(
        kernel,
        out_shape=jax.ShapeDtypeStruct((M, E), qkv.dtype),
        grid=(B, HG, nq, nk),
        in_specs=[kpm_spec, q_spec, k_spec, v_spec],
        out_specs=o_spec,
        scratch_shapes=[
            pltpu.VMEM((G, tq, 1), jnp.float32),   # running max m
            pltpu.VMEM((G, tq, 1), jnp.float32),   # running denom l
            pltpu.VMEM((G, tq, D), jnp.float32),   # running accumulator
        ],
        compiler_params=pltpu.CompilerParams(
            dimension_semantics=("parallel", "parallel", "parallel", "arbitrary")),
    )(kpm3, qkv, qkv, qkv)


# ---------------------------------------------------------------------------
# Module wrapper (FlashCausalAttention.forward)
# ---------------------------------------------------------------------------

def init_params(key, d_model, dtype=jnp.float32):
    """Weights stored pre-transposed (in_features, out_features) at init so no per-call
    HBM transpose/cast pass is needed.  Columns of wqkv_wt are ordered (three, head, d),
    matching FlashMHA's fused Wqkv layout."""
    k1, k2, k3, k4 = jax.random.split(key, 4)
    s = 1.0 / math.sqrt(d_model)
    return {
        "wqkv_wt": jax.random.uniform(k1, (d_model, 3 * d_model), jnp.float32,
                                      -s, s).astype(dtype),
        "wqkv_b": jax.random.uniform(k2, (3 * d_model,), jnp.float32, -s, s).astype(dtype),
        "out_wt": jax.random.uniform(k3, (d_model, d_model), jnp.float32,
                                     -s, s).astype(dtype),
        "out_b": jax.random.uniform(k4, (d_model,), jnp.float32, -s, s).astype(dtype),
    }


def flash_causal_attention(x, key_padding_mask, params, n_heads):
    """x: (B, S, E); key_padding_mask: (B, S) bool (True = valid token).

    Returns (output (B, S, E), None) — matching FlashMHA(need_weights=False).
    Pass bf16 x + bf16 params to run the MXU matmuls in bf16 (accumulators stay f32).
    """
    B, S, E = x.shape
    H = n_heads
    D = E // H
    assert D * H == E

    # Fused QKV projection (tiled/pipelined Pallas matmul): (B*S, 3E).
    qkv = _linear(x.reshape(B * S, E), params["wqkv_wt"], params["wqkv_b"])

    # Flash attention reads q/k/v straight out of the (B*S, 3E) buffer and writes the
    # head-merged (B*S, E) output directly -> no (B,H,S,D) transpose passes in HBM.
    kpm3 = key_padding_mask.reshape(B, 1, S).astype(jnp.float32)
    o = _flash_attention(qkv, kpm3, B=B, S=S, E=E, H=H, D=D)

    # Output projection (the original marks out_proj._is_residual — init-time only).
    out = _linear(o, params["out_wt"], params["out_b"]).reshape(B, S, E)
    return out, None


# ---------------------------------------------------------------------------
# Pure-JAX reference (sanity check)
# ---------------------------------------------------------------------------

def _reference(x, key_padding_mask, params, n_heads):
    B, S, E = x.shape
    D = E // n_heads
    hi = jax.lax.Precision.HIGHEST
    qkv = (jnp.einsum("bse,ef->bsf", x, params["wqkv_wt"], precision=hi)
           + params["wqkv_b"])
    qkv = qkv.reshape(B, S, 3, n_heads, D)
    q, k, v = qkv[:, :, 0], qkv[:, :, 1], qkv[:, :, 2]
    scores = jnp.einsum("bqhd,bkhd->bhqk", q, k, precision=hi) / math.sqrt(D)
    causal = jnp.tril(jnp.ones((S, S), bool))
    valid = causal[None, None] & key_padding_mask[:, None, None, :]
    scores = jnp.where(valid, scores, -1e30)
    p = jax.nn.softmax(scores, axis=-1)
    o = jnp.einsum("bhqk,bkhd->bqhd", p, v, precision=hi).reshape(B, S, E)
    out = jnp.einsum("bse,ef->bsf", o, params["out_wt"], precision=hi) + params["out_b"]
    return out


# ---------------------------------------------------------------------------

if __name__ == "__main__":
    d_model, n_heads = 32, 4
    B, S = 2, 8

    key = jax.random.PRNGKey(0)
    kx, kp = jax.random.split(key)
    params = init_params(kp, d_model)
    x = jax.random.normal(kx, (B, S, d_model), jnp.float32)

    # key_padding_mask: True = valid token (flash_attn convention); pad last 3 of batch 1.
    key_padding_mask = jnp.array(
        [[True] * S,
         [True] * (S - 3) + [False] * 3], dtype=bool)

    # f32 run + correctness check against the pure-JAX reference.
    out, attn_w = flash_causal_attention(x, key_padding_mask, params, n_heads)
    out = jax.block_until_ready(out)
    assert attn_w is None
    assert out.shape == (B, S, d_model)

    ref = _reference(x, key_padding_mask, params, n_heads)
    max_err = jnp.max(jnp.abs(out - ref))
    assert jnp.allclose(out, ref, rtol=2e-3, atol=2e-3), f"max err {max_err}"

    # bf16 smoke run: params cast ONCE (init-time style); MXU matmuls run in bf16,
    # softmax stats / accumulators stay f32.
    params_bf16 = jax.tree_util.tree_map(lambda a: a.astype(jnp.bfloat16), params)
    out_bf16, _ = flash_causal_attention(
        x.astype(jnp.bfloat16), key_padding_mask, params_bf16, n_heads)
    out_bf16 = jax.block_until_ready(out_bf16)
    assert out_bf16.dtype == jnp.bfloat16
    assert jnp.max(jnp.abs(out_bf16.astype(jnp.float32) - ref)) < 0.2

    print("KERNEL_OK")
</pallas_src>

<mosaic_0001>
module attributes {stable_mosaic.version = 11 : i64} {
  func.func @_linear_kernel(%arg0: i32, %arg1: i32, %arg2: i32, %arg3: memref<16x32xf32, #tpu.memory_space<vmem>>, %arg4: memref<32x96xf32, #tpu.memory_space<vmem>>, %arg5: memref<1x96xf32, #tpu.memory_space<vmem>>, %arg6: memref<16x96xf32, #tpu.memory_space<vmem>>, %arg7: memref<16x96xf32, #tpu.memory_space<vmem>>) attributes {dimension_semantics = [#tpu.dimension_semantics<parallel>, #tpu.dimension_semantics<parallel>, #tpu.dimension_semantics<arbitrary>], iteration_bounds = array<i64: 1, 1, 1>, scalar_prefetch = 0 : i64, scratch_operands = 1 : i64, tpu.core_type = #tpu.core_type<tc>, window_params = [{transform_indices = @transform_0, window_bounds = array<i64: 16, 32>}, {transform_indices = @transform_1, window_bounds = array<i64: 32, 96>}, {transform_indices = @transform_2, window_bounds = array<i64: 1, 96>}, {transform_indices = @transform_3, window_bounds = array<i64: 16, 96>}]} {
    %c0_i32 = arith.constant 0 : i32
    %0 = arith.cmpi eq, %arg2, %c0_i32 : i32
    %1 = arith.extui %0 : i1 to i32
    %c0_i32_0 = arith.constant 0 : i32
    %2 = arith.cmpi ne, %1, %c0_i32_0 : i32
    scf.if %2 {
      %cst_10 = arith.constant 0.000000e+00 : f32
      %12 = vector.broadcast %cst_10 : f32 to vector<16x96xf32>
      %c0_11 = arith.constant 0 : index
      %c0_12 = arith.constant 0 : index
      %13 = vector.load %arg7[%c0_11, %c0_12] : memref<16x96xf32, #tpu.memory_space<vmem>>, vector<16x96xf32>
      tpu.vector_store %arg7[%c0_11, %c0_12], %12 {strides = array<i32>} : memref<16x96xf32, #tpu.memory_space<vmem>>, vector<16x96xf32>,
    } else {
    }
    %c0 = arith.constant 0 : index
    %c0_1 = arith.constant 0 : index
    %3 = vector.load %arg7[%c0, %c0_1] : memref<16x96xf32, #tpu.memory_space<vmem>>, vector<16x96xf32>
    %c0_2 = arith.constant 0 : index
    %c0_3 = arith.constant 0 : index
    %4 = vector.load %arg3[%c0_2, %c0_3] : memref<16x32xf32, #tpu.memory_space<vmem>>, vector<16x32xf32>
    %c0_4 = arith.constant 0 : index
    %c0_5 = arith.constant 0 : index
    %5 = vector.load %arg4[%c0_4, %c0_5] : memref<32x96xf32, #tpu.memory_space<vmem>>, vector<32x96xf32>
    %cst = arith.constant dense<0.000000e+00> : vector<16x96xf32>
    %6 = tpu.matmul %4, %5, %cst {dimension_numbers = #tpu.dot_dimension_numbers<[1], [0], [0], [1], [0, 0, 1, 1], [], []>} : vector<16x32xf32>, vector<32x96xf32>, vector<16x96xf32> -> vector<16x96xf32>
    %7 = arith.addf %3, %6 : vector<16x96xf32>
    %c0_6 = arith.constant 0 : index
    %c0_7 = arith.constant 0 : index
    %8 = vector.load %arg7[%c0_6, %c0_7] : memref<16x96xf32, #tpu.memory_space<vmem>>, vector<16x96xf32>
    tpu.vector_store %arg7[%c0_6, %c0_7], %7 {strides = array<i32>} : memref<16x96xf32, #tpu.memory_space<vmem>>, vector<16x96xf32>,
    %c0_i32_8 = arith.constant 0 : i32
    %9 = arith.cmpi eq, %arg2, %c0_i32_8 : i32
    %10 = arith.extui %9 : i1 to i32
    %c0_i32_9 = arith.constant 0 : i32
    %11 = arith.cmpi ne, %10, %c0_i32_9 : i32
    scf.if %11 {
      %c0_10 = arith.constant 0 : index
      %c0_11 = arith.constant 0 : index
      %12 = vector.load %arg7[%c0_10, %c0_11] : memref<16x96xf32, #tpu.memory_space<vmem>>, vector<16x96xf32>
      %c0_12 = arith.constant 0 : index
      %c0_13 = arith.constant 0 : index
      %13 = vector.load %arg5[%c0_12, %c0_13] : memref<1x96xf32, #tpu.memory_space<vmem>>, vector<1x96xf32>
      %14 = vector.broadcast %13 : vector<1x96xf32> to vector<16x96xf32>
      %15 = arith.addf %12, %14 : vector<16x96xf32>
      %c0_14 = arith.constant 0 : index
      %c0_15 = arith.constant 0 : index
      %16 = vector.load %arg6[%c0_14, %c0_15] : memref<16x96xf32, #tpu.memory_space<vmem>>, vector<16x96xf32>
      tpu.vector_store %arg6[%c0_14, %c0_15], %15 {strides = array<i32>} : memref<16x96xf32, #tpu.memory_space<vmem>>, vector<16x96xf32>,
    } else {
    }
    return
  }
  func.func @transform_0(%arg0: i32, %arg1: i32, %arg2: i32) -> (i32, i32) {
    %c0_i32 = arith.constant 0 : i32
    return %arg0, %arg2 : i32, i32
  }
  func.func @transform_1(%arg0: i32, %arg1: i32, %arg2: i32) -> (i32, i32) {
    %c0_i32 = arith.constant 0 : i32
    return %arg2, %arg1 : i32, i32
  }
  func.func @transform_2(%arg0: i32, %arg1: i32, %arg2: i32) -> (i32, i32) {
    %c0_i32 = arith.constant 0 : i32
    %c0_i32_0 = arith.constant 0 : i32
    return %c0_i32, %arg1 : i32, i32
  }
  func.func @transform_3(%arg0: i32, %arg1: i32, %arg2: i32) -> (i32, i32) {
    %c0_i32 = arith.constant 0 : i32
    return %arg0, %arg1 : i32, i32
  }
}

</mosaic_0001>

<llo_original>
// kernel: tpu_custom_call.1
$region0: #{tpu_custom_call.1}
  #allocation0 [shape = 'u32[]', space=smem, size = 0x4, offset = 0x4, fixed_abs, tag = 'smem constant byte address 0x4 - core index']
  #allocation1 [shape = 'u32[144,128]{1,0:T(1,128)}', space=vmem, size = 0x12000, scoped, tag = 'internal scratch']
  #allocation2 [shape = 'f32[16,96]{1,0:T(8,128)}', space=vmem, size = 0x2000, scoped, tag = 'scratch operand']
  %s0 = inlined_call_operand.hbm [shape: f32[16,32], index: 0, kind: input, shape index: {}]
  %s1 = inlined_call_operand.hbm [shape: f32[32,96], index: 1, kind: input, shape index: {}]
  %s2 = inlined_call_operand.vmem [shape: f32[1,96], index: 2, kind: input, shape index: {}]
  %s3 = inlined_call_operand.hbm [shape: f32[16,96], index: 3, kind: output, shape index: {}]
  %s4 = sld [smem:[#allocation0]]
  $region38: #{tpu_custom_call.1} parent=0
    _
  %s6 = ssub.s32 1, %s4
  %s7 = scalar_select 0, %s6, %s4
  $region1: #{tpu_custom_call.1} parent=0
    #allocation3 [shape = 'u8[8192]{0}', space=vmem, size = 0x2000, scoped, tag = 'input window, operand 0, single buffered']
    #allocation4 [shape = 's32[1]{0}', space=sflag, size = 0x4, scoped, tag = 'scoped memory for tpu_custom_call.1']
    #allocation5 [shape = 's32[1]{0}', space=sflag, size = 0x4, scoped, tag = 'scoped memory for tpu_custom_call.1']
    #allocation6 [shape = 'u8[16384]{0}', space=vmem, size = 0x4000, scoped, tag = 'input window, operand 1, single buffered']
    #allocation7 [shape = 's32[1]{0}', space=sflag, size = 0x4, scoped, tag = 'scoped memory for tpu_custom_call.1']
    #allocation8 [shape = 'u8[8192]{0}', space=vmem, size = 0x2000, scoped, tag = 'output window, operand 0, single buffered']
    %8 = vsyncpa [#allocation4], 0
    %9 = vsyncpa [#allocation7], 0
    %10 = vsyncpa [#allocation5], 0
    // Predicated region
    $region2: #{tpu_custom_call.1} parent=1 // pred_check
      _
    $region3: #{tpu_custom_call.1} parent=1 // pred_check_branch
      %12 = sbr.rel (0) target = $region5
    $region4: #{tpu_custom_call.1} parent=1 // pred_region
      %s14 = ssub.s32 256, 256
      %15 = vsyncadd [#allocation4], %s14
      %s16 = sshll.u32 [#allocation3], 4
      %s17 = int_to_ptr.vmem [resolvable:$true] %s16
      %22 = dma.hbm_to_vmem [thread:$0]  %s0, 256, %s17, [#allocation4], 128, 128, 8
    $region5: #{tpu_custom_call.1} parent=1 // pred_fallthru
      _
    // Predicated region
    $region6: #{tpu_custom_call.1} parent=1 // pred_check
      _
    $region7: #{tpu_custom_call.1} parent=1 // pred_check_branch
      %24 = sbr.rel (0) target = $region9
    $region8: #{tpu_custom_call.1} parent=1 // pred_region
      %s26 = ssub.s32 512, 512
      %27 = vsyncadd [#allocation7], %s26
      %s28 = sshll.u32 [#allocation6], 4
      %s29 = int_to_ptr.vmem [resolvable:$true] %s28
      %34 = dma.hbm_to_vmem [thread:$0]  %s1, 512, %s29, [#allocation7], 128, 128, 8
    $region9: #{tpu_custom_call.1} parent=1 // pred_fallthru
      _
    // Predicated region
    $region10: #{tpu_custom_call.1} parent=1 // pred_check
      _
    $region11: #{tpu_custom_call.1} parent=1 // pred_check_branch
      %36 = sbr.rel (0) target = $region13
    $region12: #{tpu_custom_call.1} parent=1 // pred_region
      _
    $region13: #{tpu_custom_call.1} parent=1 // pred_fallthru
      _
    // Predicated region
    $region14: #{tpu_custom_call.1} parent=1 // pred_check
      _
    $region15: #{tpu_custom_call.1} parent=1 // pred_check_branch
      %38 = sbr.rel (0) target = $region17
    $region16: #{tpu_custom_call.1} parent=1 // pred_region
      %39 = dma.done [#allocation4], 256
    $region17: #{tpu_custom_call.1} parent=1 // pred_fallthru
      _
    // Predicated region
    $region18: #{tpu_custom_call.1} parent=1 // pred_check
      _
    $region19: #{tpu_custom_call.1} parent=1 // pred_check_branch
      %41 = sbr.rel (0) target = $region21
    $region20: #{tpu_custom_call.1} parent=1 // pred_region
      %42 = dma.done [#allocation7], 512
    $region21: #{tpu_custom_call.1} parent=1 // pred_fallthru
      _
    %p43 = scmp.eq.s32.totalorder 0, 0
    // Predicated region
    $region22: #{tpu_custom_call.1} parent=1 // pred_check
      %p44 = pneg %p43
    $region23: #{tpu_custom_call.1} parent=1 // pred_check_branch
      %46 = sbr.rel (%p44) target = $region25
    $region24: #{tpu_custom_call.1} parent=1 // pred_region
      %vm47 = vcmask 785408
      %48 = vst.msk [vmem:[#allocation2] sm:$0xff] %vm47, 0.0
      %49 = vst.msk [vmem:[#allocation2 + $0x8] sm:$0xff] %vm47, 0.0
    $region25: #{tpu_custom_call.1} parent=1 // pred_fallthru
      _
    %v50 = vld [vmem:[#allocation2] sm:$0xff]
    %v51 = vld [vmem:[#allocation2 + $0x8] sm:$0xff]
    %v52 = vld [vmem:[#allocation3] sm:$0xff]
    %v53 = vld [vmem:[#allocation3 + $0x8] sm:$0xff]
    %v54 = vld [vmem:[#allocation6] sm:$0xff]
    %v55 = vld [vmem:[#allocation6 + $0x8] sm:$0xff]
    %v56 = vld [vmem:[#allocation6 + $0x10] sm:$0xff]
    %v57 = vld [vmem:[#allocation6 + $0x18] sm:$0xff]
    %vm58 = vcmask 261120
    %v60 = vsel %vm58, %v52, 0
    %v63 = vsel %vm58, %v53, 0
    %65 = vmatprep.subr.mxu0 0.0
    %66 = vmatpush1.msra.mxu0 %v54
    %67 = vmatprep.subr.mxu0 0.0
    %68 = vmatpush1.msra.mxu0 %v55
    %69 = vmatprep.subr.mxu0 0.0
    %70 = vmatpush1.msra.mxu0 %v56
    %71 = vmatprep.subr.mxu0 0.0
    %72 = vmatpush1.msra.mxu0 %v57
    %73 = vmatprep.subr.mxu0 0.0
    %74 = vmatpush1.msra.mxu0 0.0
    %75 = vmatprep.subr.mxu0 0.0
    %76 = vmatpush1.msra.mxu0 0.0
    %77 = vmatprep.subr.mxu0 0.0
    %78 = vmatpush1.msra.mxu0 0.0
    %79 = vmatprep.subr.mxu0 0.0
    %80 = vmatpush1.msra.mxu0 0.0
    %81 = vmatprep.subr.mxu0 0.0
    %82 = vmatpush1.msra.mxu0 0.0
    %83 = vmatprep.subr.mxu0 0.0
    %84 = vmatpush1.msra.mxu0 0.0
    %85 = vmatprep.subr.mxu0 0.0
    %86 = vmatpush1.msra.mxu0 0.0
    %87 = vmatprep.subr.mxu0 0.0
    %88 = vmatpush1.msra.mxu0 0.0
    %89 = vmatprep.subr.mxu0 0.0
    %90 = vmatpush1.msra.mxu0 0.0
    %91 = vmatprep.subr.mxu0 0.0
    %92 = vmatpush1.msra.mxu0 0.0
    %93 = vmatprep.subr.mxu0 0.0
    %94 = vmatpush1.msra.mxu0 0.0
    %95 = vmatprep.subr.mxu0 0.0
    %96 = vmatpush1.msra.mxu0 0.0
    %97 = vmatprep.subr.mxu0 0.0
    %98 = vmatpush1.msra.mxu0 0.0
    %99 = vmatprep.subr.mxu0 0.0
    %100 = vmatpush1.msra.mxu0 0.0
    %101 = vmatprep.subr.mxu0 0.0
    %102 = vmatpush1.msra.mxu0 0.0
    %103 = vmatprep.subr.mxu0 0.0
    %104 = vmatpush1.msra.mxu0 0.0
    %105 = vmatprep.subr.mxu0 0.0
    %106 = vmatpush1.msra.mxu0 0.0
    %107 = vmatprep.subr.mxu0 0.0
    %108 = vmatpush1.msra.mxu0 0.0
    %109 = vmatprep.subr.mxu0 0.0
    %110 = vmatpush1.msra.mxu0 0.0
    %111 = vmatprep.subr.mxu0 0.0
    %112 = vmatpush1.msra.mxu0 0.0
    %113 = vmatprep.subr.mxu0 0.0
    %114 = vmatpush1.msra.mxu0 0.0
    %115 = vmatprep.subr.mxu0 0.0
    %116 = vmatpush1.msra.mxu0 0.0
    %117 = vmatprep.subr.mxu0 0.0
    %118 = vmatpush1.msra.mxu0 0.0
    %119 = vmatprep.subr.mxu0 0.0
    %120 = vmatpush1.msra.mxu0 0.0
    %121 = vmatprep.subr.mxu0 0.0
    %122 = vmatpush1.msra.mxu0 0.0
    %123 = vmatprep.subr.mxu0 0.0
    %124 = vmatpush1.msra.mxu0 0.0
    %125 = vmatprep.subr.mxu0 0.0
    %126 = vmatpush1.msra.mxu0 0.0
    %127 = vmatprep.subr.mxu0 0.0
    %128 = vmatpush1.msra.mxu0 0.0
    %129 = vmatprep.mubr.f32.mxu0 0.0
    %130 = vmatmul.mubr.f32.gmra.mrb[0].mxu0 %v60
    %v131 = vpop.f32.mrb[0].mxu0
    %v132 = vadd.f32 0.0, %v131
    %v133 = vpop.f32.mrb[0].mxu0
    %134 = vmatprep.mubr.f32.mxu0 0.0
    %135 = vmatmul.mubr.f32.gmra.mrb[0].mxu0 %v63
    %v136 = vpop.f32.mrb[0].mxu0
    %v137 = vadd.f32 0.0, %v136
    %v138 = vpop.f32.mrb[0].mxu0
    %139 = vdwg.mxu0
    %v140 = vadd.f32 %v50, %v132
    %v141 = vadd.f32 %v51, %v137
    %vm142 = vcmask 785408
    %143 = vst.msk [vmem:[#allocation2] sm:$0xff] %vm142, %v140
    %144 = vst.msk [vmem:[#allocation2 + $0x8] sm:$0xff] %vm142, %v141
    // Predicated region
    $region26: #{tpu_custom_call.1} parent=1 // pred_check
      %p145 = pneg %p43
    $region27: #{tpu_custom_call.1} parent=1 // pred_check_branch
      %147 = sbr.rel (%p145) target = $region29
    $region28: #{tpu_custom_call.1} parent=1 // pred_region
      %v148 = vld [vmem:[#allocation2] sm:$0xff]
      %v149 = vld [vmem:[#allocation2 + $0x8] sm:$0xff]
      %v150 = vld [vmem:[%s2] sm:$0x1]
      %v152 = vlaneseq
      %v153 = vshrl.u32 %v152, 7
      %v154 = vsub.s32 0, %v153
      %v155 = vrot.slane %v150, %v154
      %v157 = vadd.f32 %v148, %v155
      %v158 = vadd.f32 %v149, %v155
      %159 = vst.msk [vmem:[#allocation8] sm:$0xff] %vm142, %v157
      %160 = vst.msk [vmem:[#allocation8 + $0x8] sm:$0xff] %vm142, %v158
    $region29: #{tpu_custom_call.1} parent=1 // pred_fallthru
      _
    // Predicated region
    $region30: #{tpu_custom_call.1} parent=1 // pred_check
      _
    $region31: #{tpu_custom_call.1} parent=1 // pred_check_branch
      %162 = sbr.rel (0) target = $region33
    $region32: #{tpu_custom_call.1} parent=1 // pred_region
      %s164 = ssub.s32 256, 256
      %165 = vsyncadd [#allocation5], %s164
      %s166 = sshll.u32 [#allocation8], 4
      %s167 = int_to_ptr.vmem [resolvable:$true] %s166
      %172 = dma.vmem_to_hbm [thread:$0]  %s167, 256, %s3, [#allocation5], 128, 128, 8
    $region33: #{tpu_custom_call.1} parent=1 // pred_fallthru
      _
    // Predicated region
    $region34: #{tpu_custom_call.1} parent=1 // pred_check
      _
    $region35: #{tpu_custom_call.1} parent=1 // pred_check_branch
      %174 = sbr.rel (0) target = $region37
    $region36: #{tpu_custom_call.1} parent=1 // pred_region
      %175 = dma.done [#allocation5], 256
    $region37: #{tpu_custom_call.1} parent=1 // pred_fallthru
      _
    %176 = vsyncpa [#allocation4], 1
    %177 = vsyncpa [#allocation7], 1
    %178 = vsyncpa [#allocation5], 1

</llo_original>
